<compile_context>
chip_gen: v7x
topology: tpu7x:2x2x1
jax: 0.10.0
libtpu: 0.0.40
codegen_flags: <defaults>
</compile_context>

<pallas_src>
import functools

import jax
import jax.numpy as jnp
from jax.experimental import pallas as pl
from jax.experimental.pallas import tpu as pltpu

FEAT = 128  # in_features == out_features == 128 for every fc layer


def _fusion_net_kernel(i_ref, g_ref,
                       w1_ref, b1_ref,
                       w2_ref, b2_ref,
                       w3_ref, b3_ref,
                       w4_ref, b4_ref,
                       out_ref):
    # Batch tile of I and G: (TB, 128). Weights are (128, 128) already laid
    # out as x @ W (transposed from the PyTorch (out, in) layout in the
    # wrapper). Biases are (1, 128) and broadcast over the batch tile.
    x_i = i_ref[...].astype(jnp.float32)
    x_g = g_ref[...].astype(jnp.float32)

    w1 = w1_ref[...].astype(jnp.float32)
    w2 = w2_ref[...].astype(jnp.float32)
    w3 = w3_ref[...].astype(jnp.float32)
    w4 = w4_ref[...].astype(jnp.float32)
    b1 = b1_ref[...].astype(jnp.float32)
    b2 = b2_ref[...].astype(jnp.float32)
    b3 = b3_ref[...].astype(jnp.float32)
    b4 = b4_ref[...].astype(jnp.float32)

    # fc1 applied to I and G separately, then summed (matches PyTorch order).
    h_i = jnp.dot(x_i, w1, preferred_element_type=jnp.float32) + b1
    h_g = jnp.dot(x_g, w1, preferred_element_type=jnp.float32) + b1
    h = h_i + h_g

    # fc2 -> fc3 -> fc4 (no nonlinearities in the reference module).
    h = jnp.dot(h, w2, preferred_element_type=jnp.float32) + b2
    h = jnp.dot(h, w3, preferred_element_type=jnp.float32) + b3
    h = jnp.dot(h, w4, preferred_element_type=jnp.float32) + b4

    out_ref[...] = h.astype(out_ref.dtype)


def _pick_batch_tile(batch):
    """Largest batch tile that keeps double-buffered VMEM use tiny.

    A (TB, 128) f32 tile is TB * 512 bytes; at TB=512 that's 256 KiB per
    buffer, so 2 inputs x 2 pipeline buffers + weights is well under even the
    16 MiB v5e default scoped-VMEM limit while amortizing the ~0.35 us
    per-grid-step overhead.
    """
    if batch <= 512:
        return batch
    return 512  # multiple of 8 (sublane granularity)


def fusion_net_forward(I, G, params, *, tb=None):
    """params = [(w1, b1), (w2, b2), (w3, b3), (w4, b4)] in PyTorch layout:
    w_k has shape (out_features, in_features), b_k has shape (out_features,).
    """
    assert I.ndim == 2 and G.ndim == 2
    assert I.shape == G.shape
    B, D = I.shape
    assert D == FEAT, f"FusionNet expects feature dim {FEAT}, got {D}"

    (w1, b1), (w2, b2), (w3, b3), (w4, b4) = params
    # Transpose to (in, out) so the kernel computes x @ W on the MXU.
    w1t, w2t, w3t, w4t = (w.T.astype(jnp.float32) for w in (w1, w2, w3, w4))
    b1r, b2r, b3r, b4r = (b.reshape(1, FEAT).astype(jnp.float32)
                          for b in (b1, b2, b3, b4))

    if tb is None:
        tb = _pick_batch_tile(B)
    grid = (pl.cdiv(B, tb),)

    x_spec = pl.BlockSpec((tb, FEAT), lambda i: (i, 0))
    w_spec = pl.BlockSpec((FEAT, FEAT), lambda i: (0, 0))   # resident weights
    b_spec = pl.BlockSpec((1, FEAT), lambda i: (0, 0))      # resident biases
    out_spec = pl.BlockSpec((tb, FEAT), lambda i: (i, 0))   # lane-dense output

    # Roofline hint for XLA: 5 (TB,128)x(128,128) matmuls per batch row tile.
    cost = pl.CostEstimate(
        flops=5 * 2 * B * FEAT * FEAT,
        transcendentals=0,
        bytes_accessed=(3 * B * FEAT + 4 * FEAT * FEAT + 4 * FEAT) * 4,
    )

    out = pl.pallas_call(
        _fusion_net_kernel,
        out_shape=jax.ShapeDtypeStruct((B, FEAT), I.dtype),
        grid=grid,
        in_specs=[
            x_spec, x_spec,              # I, G
            w_spec, b_spec,              # fc1
            w_spec, b_spec,              # fc2
            w_spec, b_spec,              # fc3
            w_spec, b_spec,              # fc4
        ],
        out_specs=out_spec,
        compiler_params=pltpu.CompilerParams(
            dimension_semantics=("parallel",),   # shard grid across TCs (v7x)
            vmem_limit_bytes=32 * 1024 * 1024,   # explicit, uniform across gens
        ),
        cost_estimate=cost,
    )(I, G, w1t, b1r, w2t, b2r, w3t, b3r, w4t, b4r)
    return out


if __name__ == "__main__":
    key = jax.random.PRNGKey(0)
    keys = jax.random.split(key, 10)

    B = 8  # small demo batch; kernel tiles up to TB=512 rows for large B
    I = jax.random.normal(keys[0], (B, FEAT), dtype=jnp.float32)
    G = jax.random.normal(keys[1], (B, FEAT), dtype=jnp.float32)

    def init_linear(kw, kb):
        # PyTorch nn.Linear default init: U(-1/sqrt(fan_in), +1/sqrt(fan_in))
        bound = 1.0 / (FEAT ** 0.5)
        w = jax.random.uniform(kw, (FEAT, FEAT), jnp.float32, -bound, bound)
        b = jax.random.uniform(kb, (FEAT,), jnp.float32, -bound, bound)
        return w, b

    params = [init_linear(keys[2 + 2 * i], keys[3 + 2 * i]) for i in range(4)]

    out = fusion_net_forward(I, G, params)
    jax.block_until_ready(out)

    # Pure-JAX reference (PyTorch Linear: y = x @ W.T + b).
    def linear(x, w, b):
        return x @ w.T + b

    (w1, b1), (w2, b2), (w3, b3), (w4, b4) = params
    h = linear(I, w1, b1) + linear(G, w1, b1)
    h = linear(h, w2, b2)
    h = linear(h, w3, b3)
    ref = linear(h, w4, b4)

    assert out.shape == ref.shape
    assert jnp.allclose(out, ref, atol=1e-4, rtol=1e-4), (out, ref)

    print("KERNEL_OK")
</pallas_src>

<mosaic_0001>
module attributes {stable_mosaic.version = 11 : i64} {
  func.func @_fusion_net_kernel(%arg0: i32, %arg1: memref<8x128xf32, #tpu.memory_space<vmem>>, %arg2: memref<8x128xf32, #tpu.memory_space<vmem>>, %arg3: memref<128x128xf32, #tpu.memory_space<vmem>>, %arg4: memref<1x128xf32, #tpu.memory_space<vmem>>, %arg5: memref<128x128xf32, #tpu.memory_space<vmem>>, %arg6: memref<1x128xf32, #tpu.memory_space<vmem>>, %arg7: memref<128x128xf32, #tpu.memory_space<vmem>>, %arg8: memref<1x128xf32, #tpu.memory_space<vmem>>, %arg9: memref<128x128xf32, #tpu.memory_space<vmem>>, %arg10: memref<1x128xf32, #tpu.memory_space<vmem>>, %arg11: memref<8x128xf32, #tpu.memory_space<vmem>>) attributes {dimension_semantics = [#tpu.dimension_semantics<parallel>], iteration_bounds = array<i64: 1>, scalar_prefetch = 0 : i64, scratch_operands = 0 : i64, tpu.core_type = #tpu.core_type<tc>, window_params = [{transform_indices = @transform_0, window_bounds = array<i64: 8, 128>}, {transform_indices = @transform_1, window_bounds = array<i64: 8, 128>}, {pipeline_mode = #tpu.pipeline_mode<synchronous>, transform_indices = @transform_2, window_bounds = array<i64: 128, 128>}, {pipeline_mode = #tpu.pipeline_mode<synchronous>, transform_indices = @transform_3, window_bounds = array<i64: 1, 128>}, {pipeline_mode = #tpu.pipeline_mode<synchronous>, transform_indices = @transform_4, window_bounds = array<i64: 128, 128>}, {pipeline_mode = #tpu.pipeline_mode<synchronous>, transform_indices = @transform_5, window_bounds = array<i64: 1, 128>}, {pipeline_mode = #tpu.pipeline_mode<synchronous>, transform_indices = @transform_6, window_bounds = array<i64: 128, 128>}, {pipeline_mode = #tpu.pipeline_mode<synchronous>, transform_indices = @transform_7, window_bounds = array<i64: 1, 128>}, {pipeline_mode = #tpu.pipeline_mode<synchronous>, transform_indices = @transform_8, window_bounds = array<i64: 128, 128>}, {pipeline_mode = #tpu.pipeline_mode<synchronous>, transform_indices = @transform_9, window_bounds = array<i64: 1, 128>}, {transform_indices = @transform_10, window_bounds = array<i64: 8, 128>}]} {
    %c0 = arith.constant 0 : index
    %c0_0 = arith.constant 0 : index
    %0 = vector.load %arg1[%c0, %c0_0] : memref<8x128xf32, #tpu.memory_space<vmem>>, vector<8x128xf32>
    %c0_1 = arith.constant 0 : index
    %c0_2 = arith.constant 0 : index
    %1 = vector.load %arg2[%c0_1, %c0_2] : memref<8x128xf32, #tpu.memory_space<vmem>>, vector<8x128xf32>
    %c0_3 = arith.constant 0 : index
    %c0_4 = arith.constant 0 : index
    %2 = vector.load %arg3[%c0_3, %c0_4] : memref<128x128xf32, #tpu.memory_space<vmem>>, vector<128x128xf32>
    %c0_5 = arith.constant 0 : index
    %c0_6 = arith.constant 0 : index
    %3 = vector.load %arg5[%c0_5, %c0_6] : memref<128x128xf32, #tpu.memory_space<vmem>>, vector<128x128xf32>
    %c0_7 = arith.constant 0 : index
    %c0_8 = arith.constant 0 : index
    %4 = vector.load %arg7[%c0_7, %c0_8] : memref<128x128xf32, #tpu.memory_space<vmem>>, vector<128x128xf32>
    %c0_9 = arith.constant 0 : index
    %c0_10 = arith.constant 0 : index
    %5 = vector.load %arg9[%c0_9, %c0_10] : memref<128x128xf32, #tpu.memory_space<vmem>>, vector<128x128xf32>
    %c0_11 = arith.constant 0 : index
    %c0_12 = arith.constant 0 : index
    %6 = vector.load %arg4[%c0_11, %c0_12] : memref<1x128xf32, #tpu.memory_space<vmem>>, vector<1x128xf32>
    %c0_13 = arith.constant 0 : index
    %c0_14 = arith.constant 0 : index
    %7 = vector.load %arg6[%c0_13, %c0_14] : memref<1x128xf32, #tpu.memory_space<vmem>>, vector<1x128xf32>
    %c0_15 = arith.constant 0 : index
    %c0_16 = arith.constant 0 : index
    %8 = vector.load %arg8[%c0_15, %c0_16] : memref<1x128xf32, #tpu.memory_space<vmem>>, vector<1x128xf32>
    %c0_17 = arith.constant 0 : index
    %c0_18 = arith.constant 0 : index
    %9 = vector.load %arg10[%c0_17, %c0_18] : memref<1x128xf32, #tpu.memory_space<vmem>>, vector<1x128xf32>
    %cst = arith.constant dense<0.000000e+00> : vector<8x128xf32>
    %10 = tpu.matmul %0, %2, %cst {dimension_numbers = #tpu.dot_dimension_numbers<[1], [0], [0], [1], [0, 0, 1, 1], [], []>} : vector<8x128xf32>, vector<128x128xf32>, vector<8x128xf32> -> vector<8x128xf32>
    %11 = vector.broadcast %6 : vector<1x128xf32> to vector<8x128xf32>
    %12 = arith.addf %10, %11 : vector<8x128xf32>
    %cst_19 = arith.constant dense<0.000000e+00> : vector<8x128xf32>
    %13 = tpu.matmul %1, %2, %cst_19 {dimension_numbers = #tpu.dot_dimension_numbers<[1], [0], [0], [1], [0, 0, 1, 1], [], []>} : vector<8x128xf32>, vector<128x128xf32>, vector<8x128xf32> -> vector<8x128xf32>
    %14 = vector.broadcast %6 : vector<1x128xf32> to vector<8x128xf32>
    %15 = arith.addf %13, %14 : vector<8x128xf32>
    %16 = arith.addf %12, %15 : vector<8x128xf32>
    %cst_20 = arith.constant dense<0.000000e+00> : vector<8x128xf32>
    %17 = tpu.matmul %16, %3, %cst_20 {dimension_numbers = #tpu.dot_dimension_numbers<[1], [0], [0], [1], [0, 0, 1, 1], [], []>} : vector<8x128xf32>, vector<128x128xf32>, vector<8x128xf32> -> vector<8x128xf32>
    %18 = vector.broadcast %7 : vector<1x128xf32> to vector<8x128xf32>
    %19 = arith.addf %17, %18 : vector<8x128xf32>
    %cst_21 = arith.constant dense<0.000000e+00> : vector<8x128xf32>
    %20 = tpu.matmul %19, %4, %cst_21 {dimension_numbers = #tpu.dot_dimension_numbers<[1], [0], [0], [1], [0, 0, 1, 1], [], []>} : vector<8x128xf32>, vector<128x128xf32>, vector<8x128xf32> -> vector<8x128xf32>
    %21 = vector.broadcast %8 : vector<1x128xf32> to vector<8x128xf32>
    %22 = arith.addf %20, %21 : vector<8x128xf32>
    %cst_22 = arith.constant dense<0.000000e+00> : vector<8x128xf32>
    %23 = tpu.matmul %22, %5, %cst_22 {dimension_numbers = #tpu.dot_dimension_numbers<[1], [0], [0], [1], [0, 0, 1, 1], [], []>} : vector<8x128xf32>, vector<128x128xf32>, vector<8x128xf32> -> vector<8x128xf32>
    %24 = vector.broadcast %9 : vector<1x128xf32> to vector<8x128xf32>
    %25 = arith.addf %23, %24 : vector<8x128xf32>
    %c0_23 = arith.constant 0 : index
    %c0_24 = arith.constant 0 : index
    %26 = vector.load %arg11[%c0_23, %c0_24] : memref<8x128xf32, #tpu.memory_space<vmem>>, vector<8x128xf32>
    tpu.vector_store %arg11[%c0_23, %c0_24], %25 {strides = array<i32>} : memref<8x128xf32, #tpu.memory_space<vmem>>, vector<8x128xf32>,
    return
  }
  func.func @transform_0(%arg0: i32) -> (i32, i32) {
    %c0_i32 = arith.constant 0 : i32
    %c0_i32_0 = arith.constant 0 : i32
    return %arg0, %c0_i32 : i32, i32
  }
  func.func @transform_1(%arg0: i32) -> (i32, i32) {
    %c0_i32 = arith.constant 0 : i32
    %c0_i32_0 = arith.constant 0 : i32
    return %arg0, %c0_i32 : i32, i32
  }
  func.func @transform_2(%arg0: i32) -> (i32, i32) {
    %c0_i32 = arith.constant 0 : i32
    %c0_i32_0 = arith.constant 0 : i32
    %c0_i32_1 = arith.constant 0 : i32
    return %c0_i32, %c0_i32_0 : i32, i32
  }
  func.func @transform_3(%arg0: i32) -> (i32, i32) {
    %c0_i32 = arith.constant 0 : i32
    %c0_i32_0 = arith.constant 0 : i32
    %c0_i32_1 = arith.constant 0 : i32
    return %c0_i32, %c0_i32_0 : i32, i32
  }
  func.func @transform_4(%arg0: i32) -> (i32, i32) {
    %c0_i32 = arith.constant 0 : i32
    %c0_i32_0 = arith.constant 0 : i32
    %c0_i32_1 = arith.constant 0 : i32
    return %c0_i32, %c0_i32_0 : i32, i32
  }
  func.func @transform_5(%arg0: i32) -> (i32, i32) {
    %c0_i32 = arith.constant 0 : i32
    %c0_i32_0 = arith.constant 0 : i32
    %c0_i32_1 = arith.constant 0 : i32
    return %c0_i32, %c0_i32_0 : i32, i32
  }
  func.func @transform_6(%arg0: i32) -> (i32, i32) {
    %c0_i32 = arith.constant 0 : i32
    %c0_i32_0 = arith.constant 0 : i32
    %c0_i32_1 = arith.constant 0 : i32
    return %c0_i32, %c0_i32_0 : i32, i32
  }
  func.func @transform_7(%arg0: i32) -> (i32, i32) {
    %c0_i32 = arith.constant 0 : i32
    %c0_i32_0 = arith.constant 0 : i32
    %c0_i32_1 = arith.constant 0 : i32
    return %c0_i32, %c0_i32_0 : i32, i32
  }
  func.func @transform_8(%arg0: i32) -> (i32, i32) {
    %c0_i32 = arith.constant 0 : i32
    %c0_i32_0 = arith.constant 0 : i32
    %c0_i32_1 = arith.constant 0 : i32
    return %c0_i32, %c0_i32_0 : i32, i32
  }
  func.func @transform_9(%arg0: i32) -> (i32, i32) {
    %c0_i32 = arith.constant 0 : i32
    %c0_i32_0 = arith.constant 0 : i32
    %c0_i32_1 = arith.constant 0 : i32
    return %c0_i32, %c0_i32_0 : i32, i32
  }
  func.func @transform_10(%arg0: i32) -> (i32, i32) {
    %c0_i32 = arith.constant 0 : i32
    %c0_i32_0 = arith.constant 0 : i32
    return %arg0, %c0_i32 : i32, i32
  }
}

</mosaic_0001>

<llo_original>
// kernel: tpu_custom_call.1
$region0: #{tpu_custom_call.1}
  #allocation0 [shape = 'u32[]', space=smem, size = 0x4, offset = 0x4, fixed_abs, tag = 'smem constant byte address 0x4 - core index']
  #allocation1 [shape = 'u32[144,128]{1,0:T(1,128)}', space=vmem, size = 0x12000, scoped, tag = 'internal scratch']
  %s0 = inlined_call_operand.hbm [shape: f32[8,128], index: 0, kind: input, shape index: {}]
  %s1 = inlined_call_operand.hbm [shape: f32[8,128], index: 1, kind: input, shape index: {}]
  %s2 = inlined_call_operand.hbm [shape: f32[128,128], index: 2, kind: input, shape index: {}]
  %s3 = inlined_call_operand.vmem [shape: f32[1,128], index: 3, kind: input, shape index: {}]
  %s4 = inlined_call_operand.hbm [shape: f32[128,128], index: 4, kind: input, shape index: {}]
  %s5 = inlined_call_operand.vmem [shape: f32[1,128], index: 5, kind: input, shape index: {}]
  %s6 = inlined_call_operand.hbm [shape: f32[128,128], index: 6, kind: input, shape index: {}]
  %s7 = inlined_call_operand.vmem [shape: f32[1,128], index: 7, kind: input, shape index: {}]
  %s8 = inlined_call_operand.hbm [shape: f32[128,128], index: 8, kind: input, shape index: {}]
  %s9 = inlined_call_operand.vmem [shape: f32[1,128], index: 9, kind: input, shape index: {}]
  %s10 = inlined_call_operand.hbm [shape: f32[8,128], index: 10, kind: output, shape index: {}]
  %s11 = sld [smem:[#allocation0]]
  $region74: #{tpu_custom_call.1} parent=0
    _
  %s13 = ssub.s32 1, %s11
  %s14 = scalar_select 0, %s13, %s11
  $region1: #{tpu_custom_call.1} parent=0
    #allocation2 [shape = 'u8[4096]{0}', space=vmem, size = 0x1000, scoped, tag = 'input window, operand 0, single buffered']
    #allocation3 [shape = 's32[1]{0}', space=sflag, size = 0x4, scoped, tag = 'scoped memory for tpu_custom_call.1']
    #allocation4 [shape = 's32[1]{0}', space=sflag, size = 0x4, scoped, tag = 'scoped memory for tpu_custom_call.1']
    #allocation5 [shape = 'u8[4096]{0}', space=vmem, size = 0x1000, scoped, tag = 'input window, operand 1, single buffered']
    #allocation6 [shape = 's32[1]{0}', space=sflag, size = 0x4, scoped, tag = 'scoped memory for tpu_custom_call.1']
    #allocation7 [shape = 'u8[65536]{0}', space=vmem, size = 0x10000, scoped, tag = 'input window, operand 2, single buffered']
    #allocation8 [shape = 'u8[65536]{0}', space=vmem, size = 0x10000, scoped, tag = 'input window, operand 4, single buffered']
    #allocation9 [shape = 's32[1]{0}', space=sflag, size = 0x4, scoped, tag = 'scoped memory for tpu_custom_call.1']
    #allocation10 [shape = 'u8[65536]{0}', space=vmem, size = 0x10000, scoped, tag = 'input window, operand 6, single buffered']
    #allocation11 [shape = 'u8[65536]{0}', space=vmem, size = 0x10000, scoped, tag = 'input window, operand 8, single buffered']
    #allocation12 [shape = 's32[1]{0}', space=sflag, size = 0x4, scoped, tag = 'scoped memory for tpu_custom_call.1']
    #allocation13 [shape = 'u8[4096]{0}', space=vmem, size = 0x1000, scoped, tag = 'output window, operand 0, single buffered']
    %15 = vsyncpa [#allocation3], 0
    %16 = vsyncpa [#allocation6], 0
    %17 = vsyncpa [#allocation9], 0
    %18 = vsyncpa [#allocation12], 0
    %19 = vsyncpa [#allocation4], 0
    // Predicated region
    $region2: #{tpu_custom_call.1} parent=1 // pred_check
      _
    $region3: #{tpu_custom_call.1} parent=1 // pred_check_branch
      %21 = sbr.rel (0) target = $region5
    $region4: #{tpu_custom_call.1} parent=1 // pred_region
      %s23 = ssub.s32 128, 128
      %24 = vsyncadd [#allocation3], %s23
      %s26 = sshll.u32 [#allocation2], 4
      %s27 = int_to_ptr.vmem [resolvable:$true] %s26
      %29 = dma.hbm_to_vmem [thread:$0]  %s0, 128, %s27, [#allocation3]
    $region5: #{tpu_custom_call.1} parent=1 // pred_fallthru
      _
    // Predicated region
    $region6: #{tpu_custom_call.1} parent=1 // pred_check
      _
    $region7: #{tpu_custom_call.1} parent=1 // pred_check_branch
      %31 = sbr.rel (0) target = $region9
    $region8: #{tpu_custom_call.1} parent=1 // pred_region
      %s33 = ssub.s32 128, 128
      %34 = vsyncadd [#allocation6], %s33
      %s36 = sshll.u32 [#allocation5], 4
      %s37 = int_to_ptr.vmem [resolvable:$true] %s36
      %39 = dma.hbm_to_vmem [thread:$0]  %s1, 128, %s37, [#allocation6]
    $region9: #{tpu_custom_call.1} parent=1 // pred_fallthru
      _
    // Predicated region
    $region10: #{tpu_custom_call.1} parent=1 // pred_check
      _
    $region11: #{tpu_custom_call.1} parent=1 // pred_check_branch
      %41 = sbr.rel (0) target = $region13
    $region12: #{tpu_custom_call.1} parent=1 // pred_region
      %s43 = ssub.s32 2048, 2048
      %44 = vsyncadd [#allocation6], %s43
      %s45 = sshll.u32 [#allocation7], 4
      %s46 = int_to_ptr.vmem [resolvable:$true] %s45
      %51 = dma.hbm_to_vmem [thread:$0]  %s2, 2048, %s46, [#allocation6], 128, 128, 8
    $region13: #{tpu_custom_call.1} parent=1 // pred_fallthru
      _
    // Predicated region
    $region14: #{tpu_custom_call.1} parent=1 // pred_check
      _
    $region15: #{tpu_custom_call.1} parent=1 // pred_check_branch
      %53 = sbr.rel (0) target = $region17
    $region16: #{tpu_custom_call.1} parent=1 // pred_region
      _
    $region17: #{tpu_custom_call.1} parent=1 // pred_fallthru
      _
    // Predicated region
    $region18: #{tpu_custom_call.1} parent=1 // pred_check
      _
    $region19: #{tpu_custom_call.1} parent=1 // pred_check_branch
      %55 = sbr.rel (0) target = $region21
    $region20: #{tpu_custom_call.1} parent=1 // pred_region
      %s57 = ssub.s32 2048, 2048
      %58 = vsyncadd [#allocation9], %s57
      %s59 = sshll.u32 [#allocation8], 4
      %s60 = int_to_ptr.vmem [resolvable:$true] %s59
      %65 = dma.hbm_to_vmem [thread:$0]  %s4, 2048, %s60, [#allocation9], 128, 128, 8
    $region21: #{tpu_custom_call.1} parent=1 // pred_fallthru
      _
    // Predicated region
    $region22: #{tpu_custom_call.1} parent=1 // pred_check
      _
    $region23: #{tpu_custom_call.1} parent=1 // pred_check_branch
      %67 = sbr.rel (0) target = $region25
    $region24: #{tpu_custom_call.1} parent=1 // pred_region
      _
    $region25: #{tpu_custom_call.1} parent=1 // pred_fallthru
      _
    // Predicated region
    $region26: #{tpu_custom_call.1} parent=1 // pred_check
      _
    $region27: #{tpu_custom_call.1} parent=1 // pred_check_branch
      %69 = sbr.rel (0) target = $region29
    $region28: #{tpu_custom_call.1} parent=1 // pred_region
      %s71 = ssub.s32 2048, 2048
      %72 = vsyncadd [#allocation9], %s71
      %s73 = sshll.u32 [#allocation10], 4
      %s74 = int_to_ptr.vmem [resolvable:$true] %s73
      %79 = dma.hbm_to_vmem [thread:$0]  %s6, 2048, %s74, [#allocation9], 128, 128, 8
    $region29: #{tpu_custom_call.1} parent=1 // pred_fallthru
      _
    // Predicated region
    $region30: #{tpu_custom_call.1} parent=1 // pred_check
      _
    $region31: #{tpu_custom_call.1} parent=1 // pred_check_branch
      %81 = sbr.rel (0) target = $region33
    $region32: #{tpu_custom_call.1} parent=1 // pred_region
      _
    $region33: #{tpu_custom_call.1} parent=1 // pred_fallthru
      _
    // Predicated region
    $region34: #{tpu_custom_call.1} parent=1 // pred_check
      _
    $region35: #{tpu_custom_call.1} parent=1 // pred_check_branch
      %83 = sbr.rel (0) target = $region37
    $region36: #{tpu_custom_call.1} parent=1 // pred_region
      %s85 = ssub.s32 2048, 2048
      %86 = vsyncadd [#allocation12], %s85
      %s87 = sshll.u32 [#allocation11], 4
      %s88 = int_to_ptr.vmem [resolvable:$true] %s87
      %93 = dma.hbm_to_vmem [thread:$0]  %s8, 2048, %s88, [#allocation12], 128, 128, 8
    $region37: #{tpu_custom_call.1} parent=1 // pred_fallthru
      _
    // Predicated region
    $region38: #{tpu_custom_call.1} parent=1 // pred_check
      _
    $region39: #{tpu_custom_call.1} parent=1 // pred_check_branch
      %95 = sbr.rel (0) target = $region41
    $region40: #{tpu_custom_call.1} parent=1 // pred_region
      _
    $region41: #{tpu_custom_call.1} parent=1 // pred_fallthru
      _
    // Predicated region
    $region42: #{tpu_custom_call.1} parent=1 // pred_check
      _
    $region43: #{tpu_custom_call.1} parent=1 // pred_check_branch
      %97 = sbr.rel (0) target = $region45
    $region44: #{tpu_custom_call.1} parent=1 // pred_region
      %98 = dma.done [#allocation3], 128
    $region45: #{tpu_custom_call.1} parent=1 // pred_fallthru
      _
    // Predicated region
    $region46: #{tpu_custom_call.1} parent=1 // pred_check
      _
    $region47: #{tpu_custom_call.1} parent=1 // pred_check_branch
      %100 = sbr.rel (0) target = $region49
    $region48: #{tpu_custom_call.1} parent=1 // pred_region
      %101 = dma.done [#allocation6], 128
    $region49: #{tpu_custom_call.1} parent=1 // pred_fallthru
      _
    // Predicated region
    $region50: #{tpu_custom_call.1} parent=1 // pred_check
      _
    $region51: #{tpu_custom_call.1} parent=1 // pred_check_branch
      %103 = sbr.rel (0) target = $region53
    $region52: #{tpu_custom_call.1} parent=1 // pred_region
      %104 = dma.done [#allocation6], 2048
    $region53: #{tpu_custom_call.1} parent=1 // pred_fallthru
      _
    // Predicated region
    $region54: #{tpu_custom_call.1} parent=1 // pred_check
      _
    $region55: #{tpu_custom_call.1} parent=1 // pred_check_branch
      %106 = sbr.rel (0) target = $region57
    $region56: #{tpu_custom_call.1} parent=1 // pred_region
      %107 = dma.done [#allocation9], 2048
    $region57: #{tpu_custom_call.1} parent=1 // pred_fallthru
      _
    // Predicated region
    $region58: #{tpu_custom_call.1} parent=1 // pred_check
      _
    $region59: #{tpu_custom_call.1} parent=1 // pred_check_branch
      %109 = sbr.rel (0) target = $region61
    $region60: #{tpu_custom_call.1} parent=1 // pred_region
      %110 = dma.done [#allocation9], 2048
    $region61: #{tpu_custom_call.1} parent=1 // pred_fallthru
      _
    // Predicated region
    $region62: #{tpu_custom_call.1} parent=1 // pred_check
      _
    $region63: #{tpu_custom_call.1} parent=1 // pred_check_branch
      %112 = sbr.rel (0) target = $region65
    $region64: #{tpu_custom_call.1} parent=1 // pred_region
      %113 = dma.done [#allocation12], 2048
    $region65: #{tpu_custom_call.1} parent=1 // pred_fallthru
      _
    %v114 = vld [vmem:[#allocation2] sm:$0xff]
    %v115 = vld [vmem:[#allocation5] sm:$0xff]
    %v116 = vld [vmem:[#allocation7] sm:$0xff]
    %v117 = vld [vmem:[#allocation7 + $0x8] sm:$0xff]
    %v118 = vld [vmem:[#allocation7 + $0x10] sm:$0xff]
    %v119 = vld [vmem:[#allocation7 + $0x18] sm:$0xff]
    %v120 = vld [vmem:[#allocation7 + $0x20] sm:$0xff]
    %v121 = vld [vmem:[#allocation7 + $0x28] sm:$0xff]
    %v122 = vld [vmem:[#allocation7 + $0x30] sm:$0xff]
    %v123 = vld [vmem:[#allocation7 + $0x38] sm:$0xff]
    %v124 = vld [vmem:[#allocation7 + $0x40] sm:$0xff]
    %v125 = vld [vmem:[#allocation7 + $0x48] sm:$0xff]
    %v126 = vld [vmem:[#allocation7 + $0x50] sm:$0xff]
    %v127 = vld [vmem:[#allocation7 + $0x58] sm:$0xff]
    %v128 = vld [vmem:[#allocation7 + $0x60] sm:$0xff]
    %v129 = vld [vmem:[#allocation7 + $0x68] sm:$0xff]
    %v130 = vld [vmem:[#allocation7 + $0x70] sm:$0xff]
    %v131 = vld [vmem:[#allocation7 + $0x78] sm:$0xff]
    %v132 = vld [vmem:[#allocation8] sm:$0xff]
    %v133 = vld [vmem:[#allocation8 + $0x8] sm:$0xff]
    %v134 = vld [vmem:[#allocation8 + $0x10] sm:$0xff]
    %v135 = vld [vmem:[#allocation8 + $0x18] sm:$0xff]
    %v136 = vld [vmem:[#allocation8 + $0x20] sm:$0xff]
    %v137 = vld [vmem:[#allocation8 + $0x28] sm:$0xff]
    %v138 = vld [vmem:[#allocation8 + $0x30] sm:$0xff]
    %v139 = vld [vmem:[#allocation8 + $0x38] sm:$0xff]
    %v140 = vld [vmem:[#allocation8 + $0x40] sm:$0xff]
    %v141 = vld [vmem:[#allocation8 + $0x48] sm:$0xff]
    %v142 = vld [vmem:[#allocation8 + $0x50] sm:$0xff]
    %v143 = vld [vmem:[#allocation8 + $0x58] sm:$0xff]
    %v144 = vld [vmem:[#allocation8 + $0x60] sm:$0xff]
    %v145 = vld [vmem:[#allocation8 + $0x68] sm:$0xff]
    %v146 = vld [vmem:[#allocation8 + $0x70] sm:$0xff]
    %v147 = vld [vmem:[#allocation8 + $0x78] sm:$0xff]
    %v148 = vld [vmem:[#allocation10] sm:$0xff]
    %v149 = vld [vmem:[#allocation10 + $0x8] sm:$0xff]
    %v150 = vld [vmem:[#allocation10 + $0x10] sm:$0xff]
    %v151 = vld [vmem:[#allocation10 + $0x18] sm:$0xff]
    %v152 = vld [vmem:[#allocation10 + $0x20] sm:$0xff]
    %v153 = vld [vmem:[#allocation10 + $0x28] sm:$0xff]
    %v154 = vld [vmem:[#allocation10 + $0x30] sm:$0xff]
    %v155 = vld [vmem:[#allocation10 + $0x38] sm:$0xff]
    %v156 = vld [vmem:[#allocation10 + $0x40] sm:$0xff]
    %v157 = vld [vmem:[#allocation10 + $0x48] sm:$0xff]
    %v158 = vld [vmem:[#allocation10 + $0x50] sm:$0xff]
    %v159 = vld [vmem:[#allocation10 + $0x58] sm:$0xff]
    %v160 = vld [vmem:[#allocation10 + $0x60] sm:$0xff]
    %v161 = vld [vmem:[#allocation10 + $0x68] sm:$0xff]
    %v162 = vld [vmem:[#allocation10 + $0x70] sm:$0xff]
    %v163 = vld [vmem:[#allocation10 + $0x78] sm:$0xff]
    %v164 = vld [vmem:[#allocation11] sm:$0xff]
    %v165 = vld [vmem:[#allocation11 + $0x8] sm:$0xff]
    %v166 = vld [vmem:[#allocation11 + $0x10] sm:$0xff]
    %v167 = vld [vmem:[#allocation11 + $0x18] sm:$0xff]
    %v168 = vld [vmem:[#allocation11 + $0x20] sm:$0xff]
    %v169 = vld [vmem:[#allocation11 + $0x28] sm:$0xff]
    %v170 = vld [vmem:[#allocation11 + $0x30] sm:$0xff]
    %v171 = vld [vmem:[#allocation11 + $0x38] sm:$0xff]
    %v172 = vld [vmem:[#allocation11 + $0x40] sm:$0xff]
    %v173 = vld [vmem:[#allocation11 + $0x48] sm:$0xff]
    %v174 = vld [vmem:[#allocation11 + $0x50] sm:$0xff]
    %v175 = vld [vmem:[#allocation11 + $0x58] sm:$0xff]
    %v176 = vld [vmem:[#allocation11 + $0x60] sm:$0xff]
    %v177 = vld [vmem:[#allocation11 + $0x68] sm:$0xff]
    %v178 = vld [vmem:[#allocation11 + $0x70] sm:$0xff]
    %v179 = vld [vmem:[#allocation11 + $0x78] sm:$0xff]
    %v180 = vld [vmem:[%s3] sm:$0x1]
    %v181 = vld [vmem:[%s5] sm:$0x1]
    %v182 = vld [vmem:[%s7] sm:$0x1]
    %v183 = vld [vmem:[%s9] sm:$0x1]
    %v185 = vlaneseq
    %v186 = vshrl.u32 %v185, 7
    %v187 = vsub.s32 0, %v186
    %v188 = vrot.slane %v180, %v187
    %190 = vmatprep.subr.mxu0 0.0
    %191 = vmatpush1.msra.mxu0 %v116
    %192 = vmatprep.subr.mxu0 0.0
    %193 = vmatpush1.msra.mxu0 %v117
    %194 = vmatprep.subr.mxu0 0.0
    %195 = vmatpush1.msra.mxu0 %v118
    %196 = vmatprep.subr.mxu0 0.0
    %197 = vmatpush1.msra.mxu0 %v119
    %198 = vmatprep.subr.mxu0 0.0
    %199 = vmatpush1.msra.mxu0 %v120
    %200 = vmatprep.subr.mxu0 0.0
    %201 = vmatpush1.msra.mxu0 %v121
    %202 = vmatprep.subr.mxu0 0.0
    %203 = vmatpush1.msra.mxu0 %v122
    %204 = vmatprep.subr.mxu0 0.0
    %205 = vmatpush1.msra.mxu0 %v123
    %206 = vmatprep.subr.mxu0 0.0
    %207 = vmatpush1.msra.mxu0 %v124
    %208 = vmatprep.subr.mxu0 0.0
    %209 = vmatpush1.msra.mxu0 %v125
    %210 = vmatprep.subr.mxu0 0.0
    %211 = vmatpush1.msra.mxu0 %v126
    %212 = vmatprep.subr.mxu0 0.0
    %213 = vmatpush1.msra.mxu0 %v127
    %214 = vmatprep.subr.mxu0 0.0
    %215 = vmatpush1.msra.mxu0 %v128
    %216 = vmatprep.subr.mxu0 0.0
    %217 = vmatpush1.msra.mxu0 %v129
    %218 = vmatprep.subr.mxu0 0.0
    %219 = vmatpush1.msra.mxu0 %v130
    %220 = vmatprep.subr.mxu0 0.0
    %221 = vmatpush1.msra.mxu0 %v131
    %222 = vmatprep.subr.mxu0 0.0
    %223 = vmatpush1.msra.mxu0 0.0
    %224 = vmatprep.subr.mxu0 0.0
    %225 = vmatpush1.msra.mxu0 0.0
    %226 = vmatprep.subr.mxu0 0.0
    %227 = vmatpush1.msra.mxu0 0.0
    %228 = vmatprep.subr.mxu0 0.0
    %229 = vmatpush1.msra.mxu0 0.0
    %230 = vmatprep.subr.mxu0 0.0
    %231 = vmatpush1.msra.mxu0 0.0
    %232 = vmatprep.subr.mxu0 0.0
    %233 = vmatpush1.msra.mxu0 0.0
    %234 = vmatprep.subr.mxu0 0.0
    %235 = vmatpush1.msra.mxu0 0.0
    %236 = vmatprep.subr.mxu0 0.0
    %237 = vmatpush1.msra.mxu0 0.0
    %238 = vmatprep.subr.mxu0 0.0
    %239 = vmatpush1.msra.mxu0 0.0
    %240 = vmatprep.subr.mxu0 0.0
    %241 = vmatpush1.msra.mxu0 0.0
    %242 = vmatprep.subr.mxu0 0.0
    %243 = vmatpush1.msra.mxu0 0.0
    %244 = vmatprep.subr.mxu0 0.0
    %245 = vmatpush1.msra.mxu0 0.0
    %246 = vmatprep.subr.mxu0 0.0
    %247 = vmatpush1.msra.mxu0 0.0
    %248 = vmatprep.subr.mxu0 0.0
    %249 = vmatpush1.msra.mxu0 0.0
    %250 = vmatprep.subr.mxu0 0.0
    %251 = vmatpush1.msra.mxu0 0.0
    %252 = vmatprep.subr.mxu0 0.0
    %253 = vmatpush1.msra.mxu0 0.0
    %254 = vmatprep.mubr.f32.mxu0 0.0
    %255 = vmatmul.mubr.f32.gmra.mrb[0].mxu0 %v114
    %v256 = vpop.f32.mrb[0].mxu0
    %v257 = vadd.f32 %v188, %v256
    %v258 = vpop.f32.mrb[0].mxu0
    %259 = vdwg.mxu0
    %260 = vmatprep.subr.mxu0 0.0
    %261 = vmatpush1.msra.mxu0 %v116
    %262 = vmatprep.subr.mxu0 0.0
    %263 = vmatpush1.msra.mxu0 %v117
    %264 = vmatprep.subr.mxu0 0.0
    %265 = vmatpush1.msra.mxu0 %v118
    %266 = vmatprep.subr.mxu0 0.0
    %267 = vmatpush1.msra.mxu0 %v119
    %268 = vmatprep.subr.mxu0 0.0
    %269 = vmatpush1.msra.mxu0 %v120
    %270 = vmatprep.subr.mxu0 0.0
    %271 = vmatpush1.msra.mxu0 %v121
    %272 = vmatprep.subr.mxu0 0.0
    %273 = vmatpush1.msra.mxu0 %v122
    %274 = vmatprep.subr.mxu0 0.0
    %275 = vmatpush1.msra.mxu0 %v123
    %276 = vmatprep.subr.mxu0 0.0
    %277 = vmatpush1.msra.mxu0 %v124
    %278 = vmatprep.subr.mxu0 0.0
    %279 = vmatpush1.msra.mxu0 %v125
    %280 = vmatprep.subr.mxu0 0.0
    %281 = vmatpush1.msra.mxu0 %v126
    %282 = vmatprep.subr.mxu0 0.0
    %283 = vmatpush1.msra.mxu0 %v127
    %284 = vmatprep.subr.mxu0 0.0
    %285 = vmatpush1.msra.mxu0 %v128
    %286 = vmatprep.subr.mxu0 0.0
    %287 = vmatpush1.msra.mxu0 %v129
    %288 = vmatprep.subr.mxu0 0.0
    %289 = vmatpush1.msra.mxu0 %v130
    %290 = vmatprep.subr.mxu0 0.0
    %291 = vmatpush1.msra.mxu0 %v131
    %292 = vmatprep.subr.mxu0 0.0
    %293 = vmatpush1.msra.mxu0 0.0
    %294 = vmatprep.subr.mxu0 0.0
    %295 = vmatpush1.msra.mxu0 0.0
    %296 = vmatprep.subr.mxu0 0.0
    %297 = vmatpush1.msra.mxu0 0.0
    %298 = vmatprep.subr.mxu0 0.0
    %299 = vmatpush1.msra.mxu0 0.0
    %300 = vmatprep.subr.mxu0 0.0
    %301 = vmatpush1.msra.mxu0 0.0
    %302 = vmatprep.subr.mxu0 0.0
    %303 = vmatpush1.msra.mxu0 0.0
    %304 = vmatprep.subr.mxu0 0.0
    %305 = vmatpush1.msra.mxu0 0.0
    %306 = vmatprep.subr.mxu0 0.0
    %307 = vmatpush1.msra.mxu0 0.0
    %308 = vmatprep.subr.mxu0 0.0
    %309 = vmatpush1.msra.mxu0 0.0
    %310 = vmatprep.subr.mxu0 0.0
    %311 = vmatpush1.msra.mxu0 0.0
    %312 = vmatprep.subr.mxu0 0.0
    %313 = vmatpush1.msra.mxu0 0.0
    %314 = vmatprep.subr.mxu0 0.0
    %315 = vmatpush1.msra.mxu0 0.0
    %316 = vmatprep.subr.mxu0 0.0
    %317 = vmatpush1.msra.mxu0 0.0
    %318 = vmatprep.subr.mxu0 0.0
    %319 = vmatpush1.msra.mxu0 0.0
    %320 = vmatprep.subr.mxu0 0.0
    %321 = vmatpush1.msra.mxu0 0.0
    %322 = vmatprep.subr.mxu0 0.0
    %323 = vmatpush1.msra.mxu0 0.0
    %324 = vmatprep.mubr.f32.mxu0 0.0
    %325 = vmatmul.mubr.f32.gmra.mrb[0].mxu0 %v115
    %v326 = vpop.f32.mrb[0].mxu0
    %v327 = vadd.f32 %v188, %v326
    %v328 = vpop.f32.mrb[0].mxu0
    %329 = vdwg.mxu0
    %v330 = vadd.f32 %v257, %v327
    %v332 = vlaneseq
    %v333 = vshrl.u32 %v332, 7
    %v334 = vsub.s32 0, %v333
    %v335 = vrot.slane %v181, %v334
    %337 = vmatprep.subr.mxu0 0.0
    %338 = vmatpush1.msra.mxu0 %v132
    %339 = vmatprep.subr.mxu0 0.0
    %340 = vmatpush1.msra.mxu0 %v133
    %341 = vmatprep.subr.mxu0 0.0
    %342 = vmatpush1.msra.mxu0 %v134
    %343 = vmatprep.subr.mxu0 0.0
    %344 = vmatpush1.msra.mxu0 %v135
    %345 = vmatprep.subr.mxu0 0.0
    %346 = vmatpush1.msra.mxu0 %v136
    %347 = vmatprep.subr.mxu0 0.0
    %348 = vmatpush1.msra.mxu0 %v137
    %349 = vmatprep.subr.mxu0 0.0
    %350 = vmatpush1.msra.mxu0 %v138
    %351 = vmatprep.subr.mxu0 0.0
    %352 = vmatpush1.msra.mxu0 %v139
    %353 = vmatprep.subr.mxu0 0.0
    %354 = vmatpush1.msra.mxu0 %v140
    %355 = vmatprep.subr.mxu0 0.0
    %356 = vmatpush1.msra.mxu0 %v141
    %357 = vmatprep.subr.mxu0 0.0
    %358 = vmatpush1.msra.mxu0 %v142
    %359 = vmatprep.subr.mxu0 0.0
    %360 = vmatpush1.msra.mxu0 %v143
    %361 = vmatprep.subr.mxu0 0.0
    %362 = vmatpush1.msra.mxu0 %v144
    %363 = vmatprep.subr.mxu0 0.0
    %364 = vmatpush1.msra.mxu0 %v145
    %365 = vmatprep.subr.mxu0 0.0
    %366 = vmatpush1.msra.mxu0 %v146
    %367 = vmatprep.subr.mxu0 0.0
    %368 = vmatpush1.msra.mxu0 %v147
    %369 = vmatprep.subr.mxu0 0.0
    %370 = vmatpush1.msra.mxu0 0.0
    %371 = vmatprep.subr.mxu0 0.0
    %372 = vmatpush1.msra.mxu0 0.0
    %373 = vmatprep.subr.mxu0 0.0
    %374 = vmatpush1.msra.mxu0 0.0
    %375 = vmatprep.subr.mxu0 0.0
    %376 = vmatpush1.msra.mxu0 0.0
    %377 = vmatprep.subr.mxu0 0.0
    %378 = vmatpush1.msra.mxu0 0.0
    %379 = vmatprep.subr.mxu0 0.0
    %380 = vmatpush1.msra.mxu0 0.0
    %381 = vmatprep.subr.mxu0 0.0
    %382 = vmatpush1.msra.mxu0 0.0
    %383 = vmatprep.subr.mxu0 0.0
    %384 = vmatpush1.msra.mxu0 0.0
    %385 = vmatprep.subr.mxu0 0.0
    %386 = vmatpush1.msra.mxu0 0.0
    %387 = vmatprep.subr.mxu0 0.0
    %388 = vmatpush1.msra.mxu0 0.0
    %389 = vmatprep.subr.mxu0 0.0
    %390 = vmatpush1.msra.mxu0 0.0
    %391 = vmatprep.subr.mxu0 0.0
    %392 = vmatpush1.msra.mxu0 0.0
    %393 = vmatprep.subr.mxu0 0.0
    %394 = vmatpush1.msra.mxu0 0.0
    %395 = vmatprep.subr.mxu0 0.0
    %396 = vmatpush1.msra.mxu0 0.0
    %397 = vmatprep.subr.mxu0 0.0
    %398 = vmatpush1.msra.mxu0 0.0
    %399 = vmatprep.subr.mxu0 0.0
    %400 = vmatpush1.msra.mxu0 0.0
    %401 = vmatprep.mubr.f32.mxu0 0.0
    %402 = vmatmul.mubr.f32.gmra.mrb[0].mxu0 %v330
    %v403 = vpop.f32.mrb[0].mxu0
    %v404 = vadd.f32 %v335, %v403
    %v405 = vpop.f32.mrb[0].mxu0
    %406 = vdwg.mxu0
    %v408 = vlaneseq
    %v409 = vshrl.u32 %v408, 7
    %v410 = vsub.s32 0, %v409
    %v411 = vrot.slane %v182, %v410
    %413 = vmatprep.subr.mxu0 0.0
    %414 = vmatpush1.msra.mxu0 %v148
    %415 = vmatprep.subr.mxu0 0.0
    %416 = vmatpush1.msra.mxu0 %v149
    %417 = vmatprep.subr.mxu0 0.0
    %418 = vmatpush1.msra.mxu0 %v150
    %419 = vmatprep.subr.mxu0 0.0
    %420 = vmatpush1.msra.mxu0 %v151
    %421 = vmatprep.subr.mxu0 0.0
    %422 = vmatpush1.msra.mxu0 %v152
    %423 = vmatprep.subr.mxu0 0.0
    %424 = vmatpush1.msra.mxu0 %v153
    %425 = vmatprep.subr.mxu0 0.0
    %426 = vmatpush1.msra.mxu0 %v154
    %427 = vmatprep.subr.mxu0 0.0
    %428 = vmatpush1.msra.mxu0 %v155
    %429 = vmatprep.subr.mxu0 0.0
    %430 = vmatpush1.msra.mxu0 %v156
    %431 = vmatprep.subr.mxu0 0.0
    %432 = vmatpush1.msra.mxu0 %v157
    %433 = vmatprep.subr.mxu0 0.0
    %434 = vmatpush1.msra.mxu0 %v158
    %435 = vmatprep.subr.mxu0 0.0
    %436 = vmatpush1.msra.mxu0 %v159
    %437 = vmatprep.subr.mxu0 0.0
    %438 = vmatpush1.msra.mxu0 %v160
    %439 = vmatprep.subr.mxu0 0.0
    %440 = vmatpush1.msra.mxu0 %v161
    %441 = vmatprep.subr.mxu0 0.0
    %442 = vmatpush1.msra.mxu0 %v162
    %443 = vmatprep.subr.mxu0 0.0
    %444 = vmatpush1.msra.mxu0 %v163
    %445 = vmatprep.subr.mxu0 0.0
    %446 = vmatpush1.msra.mxu0 0.0
    %447 = vmatprep.subr.mxu0 0.0
    %448 = vmatpush1.msra.mxu0 0.0
    %449 = vmatprep.subr.mxu0 0.0
    %450 = vmatpush1.msra.mxu0 0.0
    %451 = vmatprep.subr.mxu0 0.0
    %452 = vmatpush1.msra.mxu0 0.0
    %453 = vmatprep.subr.mxu0 0.0
    %454 = vmatpush1.msra.mxu0 0.0
    %455 = vmatprep.subr.mxu0 0.0
    %456 = vmatpush1.msra.mxu0 0.0
    %457 = vmatprep.subr.mxu0 0.0
    %458 = vmatpush1.msra.mxu0 0.0
    %459 = vmatprep.subr.mxu0 0.0
    %460 = vmatpush1.msra.mxu0 0.0
    %461 = vmatprep.subr.mxu0 0.0
    %462 = vmatpush1.msra.mxu0 0.0
    %463 = vmatprep.subr.mxu0 0.0
    %464 = vmatpush1.msra.mxu0 0.0
    %465 = vmatprep.subr.mxu0 0.0
    %466 = vmatpush1.msra.mxu0 0.0
    %467 = vmatprep.subr.mxu0 0.0
    %468 = vmatpush1.msra.mxu0 0.0
    %469 = vmatprep.subr.mxu0 0.0
    %470 = vmatpush1.msra.mxu0 0.0
    %471 = vmatprep.subr.mxu0 0.0
    %472 = vmatpush1.msra.mxu0 0.0
    %473 = vmatprep.subr.mxu0 0.0
    %474 = vmatpush1.msra.mxu0 0.0
    %475 = vmatprep.subr.mxu0 0.0
    %476 = vmatpush1.msra.mxu0 0.0
    %477 = vmatprep.mubr.f32.mxu0 0.0
    %478 = vmatmul.mubr.f32.gmra.mrb[0].mxu0 %v404
    %v479 = vpop.f32.mrb[0].mxu0
    %v480 = vadd.f32 %v411, %v479
    %v481 = vpop.f32.mrb[0].mxu0
    %482 = vdwg.mxu0
    %v484 = vlaneseq
    %v485 = vshrl.u32 %v484, 7
    %v486 = vsub.s32 0, %v485
    %v487 = vrot.slane %v183, %v486
    %489 = vmatprep.subr.mxu0 0.0
    %490 = vmatpush1.msra.mxu0 %v164
    %491 = vmatprep.subr.mxu0 0.0
    %492 = vmatpush1.msra.mxu0 %v165
    %493 = vmatprep.subr.mxu0 0.0
    %494 = vmatpush1.msra.mxu0 %v166
    %495 = vmatprep.subr.mxu0 0.0
    %496 = vmatpush1.msra.mxu0 %v167
    %497 = vmatprep.subr.mxu0 0.0
    %498 = vmatpush1.msra.mxu0 %v168
    %499 = vmatprep.subr.mxu0 0.0
    %500 = vmatpush1.msra.mxu0 %v169
    %501 = vmatprep.subr.mxu0 0.0
    %502 = vmatpush1.msra.mxu0 %v170
    %503 = vmatprep.subr.mxu0 0.0
    %504 = vmatpush1.msra.mxu0 %v171
    %505 = vmatprep.subr.mxu0 0.0
    %506 = vmatpush1.msra.mxu0 %v172
    %507 = vmatprep.subr.mxu0 0.0
    %508 = vmatpush1.msra.mxu0 %v173
    %509 = vmatprep.subr.mxu0 0.0
    %510 = vmatpush1.msra.mxu0 %v174
    %511 = vmatprep.subr.mxu0 0.0
    %512 = vmatpush1.msra.mxu0 %v175
    %513 = vmatprep.subr.mxu0 0.0
    %514 = vmatpush1.msra.mxu0 %v176
    %515 = vmatprep.subr.mxu0 0.0
    %516 = vmatpush1.msra.mxu0 %v177
    %517 = vmatprep.subr.mxu0 0.0
    %518 = vmatpush1.msra.mxu0 %v178
    %519 = vmatprep.subr.mxu0 0.0
    %520 = vmatpush1.msra.mxu0 %v179
    %521 = vmatprep.subr.mxu0 0.0
    %522 = vmatpush1.msra.mxu0 0.0
    %523 = vmatprep.subr.mxu0 0.0
    %524 = vmatpush1.msra.mxu0 0.0
    %525 = vmatprep.subr.mxu0 0.0
    %526 = vmatpush1.msra.mxu0 0.0
    %527 = vmatprep.subr.mxu0 0.0
    %528 = vmatpush1.msra.mxu0 0.0
    %529 = vmatprep.subr.mxu0 0.0
    %530 = vmatpush1.msra.mxu0 0.0
    %531 = vmatprep.subr.mxu0 0.0
    %532 = vmatpush1.msra.mxu0 0.0
    %533 = vmatprep.subr.mxu0 0.0
    %534 = vmatpush1.msra.mxu0 0.0
    %535 = vmatprep.subr.mxu0 0.0
    %536 = vmatpush1.msra.mxu0 0.0
    %537 = vmatprep.subr.mxu0 0.0
    %538 = vmatpush1.msra.mxu0 0.0
    %539 = vmatprep.subr.mxu0 0.0
    %540 = vmatpush1.msra.mxu0 0.0
    %541 = vmatprep.subr.mxu0 0.0
    %542 = vmatpush1.msra.mxu0 0.0
    %543 = vmatprep.subr.mxu0 0.0
    %544 = vmatpush1.msra.mxu0 0.0
    %545 = vmatprep.subr.mxu0 0.0
    %546 = vmatpush1.msra.mxu0 0.0
    %547 = vmatprep.subr.mxu0 0.0
    %548 = vmatpush1.msra.mxu0 0.0
    %549 = vmatprep.subr.mxu0 0.0
    %550 = vmatpush1.msra.mxu0 0.0
    %551 = vmatprep.subr.mxu0 0.0
    %552 = vmatpush1.msra.mxu0 0.0
    %553 = vmatprep.mubr.f32.mxu0 0.0
    %554 = vmatmul.mubr.f32.gmra.mrb[0].mxu0 %v480
    %v555 = vpop.f32.mrb[0].mxu0
    %v556 = vadd.f32 %v487, %v555
    %v557 = vpop.f32.mrb[0].mxu0
    %558 = vdwg.mxu0
    %559 = vst [vmem:[#allocation13] sm:$0xff] %v556
    // Predicated region
    $region66: #{tpu_custom_call.1} parent=1 // pred_check
      _
    $region67: #{tpu_custom_call.1} parent=1 // pred_check_branch
      %561 = sbr.rel (0) target = $region69
    $region68: #{tpu_custom_call.1} parent=1 // pred_region
      %s563 = ssub.s32 128, 128
      %564 = vsyncadd [#allocation4], %s563
      %s566 = sshll.u32 [#allocation13], 4
      %s567 = int_to_ptr.vmem [resolvable:$true] %s566
      %569 = dma.vmem_to_hbm [thread:$0]  %s567, 128, %s10, [#allocation4]
    $region69: #{tpu_custom_call.1} parent=1 // pred_fallthru
      _
    // Predicated region
    $region70: #{tpu_custom_call.1} parent=1 // pred_check
      _
    $region71: #{tpu_custom_call.1} parent=1 // pred_check_branch
      %571 = sbr.rel (0) target = $region73
    $region72: #{tpu_custom_call.1} parent=1 // pred_region
      %572 = dma.done [#allocation4], 128
    $region73: #{tpu_custom_call.1} parent=1 // pred_fallthru
      _
    %573 = vsyncpa [#allocation3], 1
    %574 = vsyncpa [#allocation6], 1
    %575 = vsyncpa [#allocation9], 1
    %576 = vsyncpa [#allocation12], 1
    %577 = vsyncpa [#allocation4], 1

</llo_original>
